<compile_context>
chip_gen: v7x
topology: tpu7x:2x2x1
jax: 0.10.0
libtpu: 0.0.40
codegen_flags: <defaults>
</compile_context>

<pallas_src>
import functools

import jax
import jax.numpy as jnp
from jax.experimental import pallas as pl
from jax.experimental.pallas import tpu as pltpu

LANES = 128
SUBLANES = 8


def _soft_dice_kernel(x_ref, t_ref, o_ref, inter_acc, union_acc, *, w0, w1, batch):
    """Grid axis 0 walks row-tiles of the flattened (B, rows, 128) inputs.

    inter_acc / union_acc: (B, tr, 128) f32 per-lane partial sums (VMEM scratch),
    cross-lane reduced only once at the final grid step.
    o_ref: SMEM f32[2*B]; [0:B] = per-batch intersection, [B:2B] = per-batch union.
    """
    j = pl.program_id(0)

    @pl.when(j == 0)
    def _init():
        inter_acc[...] = jnp.zeros_like(inter_acc)
        union_acc[...] = jnp.zeros_like(union_acc)

    x = x_ref[...].astype(jnp.float32)
    t = t_ref[...].astype(jnp.float32)
    p = jax.nn.sigmoid(x)                                  # EUP transcendental
    w = t * jnp.float32(w1 - w0) + jnp.float32(w0)
    pw = w * (2.0 * p - 1.0)
    tw = w * (2.0 * t - 1.0)
    # Fused per-lane partial accumulation: VPU only, no XLU work in the hot loop.
    inter_acc[...] += pw * tw
    union_acc[...] += pw * pw + tw * tw

    @pl.when(j == pl.num_programs(0) - 1)
    def _finalize():
        # Single cross-lane reduce per accumulator per batch row (B is tiny; static unroll).
        for b in range(batch):
            o_ref[b] = jnp.sum(inter_acc[b])
            o_ref[batch + b] = jnp.sum(union_acc[b])


def _choose_row_tile(rows, batch, max_tile_bytes=2 * 1024 * 1024):
    """Largest row-tile that (a) is a multiple of 8 (or the full extent), (b) divides
    `rows`, and (c) keeps one (batch, tr, 128) f32 tile under `max_tile_bytes`."""
    if rows % SUBLANES != 0:
        return rows  # full extent satisfies the (8,128) rule
    max_tr = max(SUBLANES, (max_tile_bytes // (batch * LANES * 4)) // SUBLANES * SUBLANES)
    if rows <= max_tr:
        return rows
    tr = max_tr
    while tr > SUBLANES and rows % tr != 0:
        tr -= SUBLANES
    return tr


def soft_dice_loss(logit_pixel, truth_pixel, *, weight=(0.2, 0.8), size_average=True):
    """Pallas equivalent of SoftDiceLoss(size_average, weight).forward(logit, truth)."""
    assert logit_pixel.shape == truth_pixel.shape
    batch = logit_pixel.shape[0]
    n = 1
    for d in logit_pixel.shape[1:]:
        n *= d
    assert n % LANES == 0, "per-batch flattened size must be a multiple of 128 lanes"
    rows = n // LANES

    x3d = logit_pixel.reshape(batch, rows, LANES)
    t3d = truth_pixel.reshape(batch, rows, LANES)

    tr = _choose_row_tile(rows, batch)
    grid = (rows // tr,)

    kernel = functools.partial(
        _soft_dice_kernel,
        w0=float(weight[0]),
        w1=float(weight[1]),
        batch=batch,
    )

    n_total = batch * n
    cost = pl.CostEstimate(
        flops=15 * n_total,            # weighting + products + accumulation
        transcendentals=n_total,       # sigmoid
        bytes_accessed=2 * n_total * 4 + 2 * batch * 4,
    )

    sums = pl.pallas_call(
        kernel,
        out_shape=jax.ShapeDtypeStruct((2 * batch,), jnp.float32),
        grid_spec=pltpu.PrefetchScalarGridSpec(
            num_scalar_prefetch=0,
            grid=grid,
            in_specs=[
                pl.BlockSpec((batch, tr, LANES), lambda j: (0, j, 0)),
                pl.BlockSpec((batch, tr, LANES), lambda j: (0, j, 0)),
            ],
            out_specs=pl.BlockSpec((2 * batch,), lambda j: (0,),
                                   memory_space=pltpu.SMEM),
            scratch_shapes=[
                pltpu.VMEM((batch, tr, LANES), jnp.float32),
                pltpu.VMEM((batch, tr, LANES), jnp.float32),
            ],
        ),
        compiler_params=pltpu.CompilerParams(
            dimension_semantics=("arbitrary",),
        ),
        cost_estimate=cost,
    )(x3d, t3d)

    inter = sums[:batch]
    union = sums[batch:]
    dice = 1.0 - 2.0 * inter / union           # O(B) combine outside the kernel
    return jnp.mean(dice) if size_average else dice


def _reference(logit_pixel, truth_pixel, weight=(0.2, 0.8), size_average=True):
    b = logit_pixel.shape[0]
    p = jax.nn.sigmoid(logit_pixel.astype(jnp.float32)).reshape(b, -1)
    t = truth_pixel.astype(jnp.float32).reshape(b, -1)
    w = t * (weight[1] - weight[0]) + weight[0]
    pw = w * (2.0 * p - 1.0)
    tw = w * (2.0 * t - 1.0)
    inter = jnp.sum(pw * tw, axis=-1)
    union = jnp.sum(pw * pw, axis=-1) + jnp.sum(tw * tw, axis=-1)
    dice = 1.0 - 2.0 * inter / union
    return jnp.mean(dice) if size_average else dice


if __name__ == "__main__":
    key = jax.random.PRNGKey(0)
    k1, k2 = jax.random.split(key)
    # NCHW: batch=2, channels=4, spatial=16x16
    logit = jax.random.normal(k1, (2, 4, 16, 16), dtype=jnp.float32)
    # binary ground-truth mask (typical dice-loss target)
    truth = jax.random.bernoulli(k2, p=0.3, shape=(2, 4, 16, 16)).astype(jnp.float32)

    loss = soft_dice_loss(logit, truth, weight=(0.2, 0.8), size_average=True)
    loss = jax.block_until_ready(loss)

    ref = _reference(logit, truth, weight=(0.2, 0.8), size_average=True)
    assert jnp.allclose(loss, ref, rtol=1e-5, atol=1e-5), (loss, ref)

    print("KERNEL_OK")
</pallas_src>

<mosaic_0001>
module attributes {stable_mosaic.version = 11 : i64} {
  func.func @_soft_dice_kernel(%arg0: i32, %arg1: memref<2x8x128xf32, #tpu.memory_space<vmem>>, %arg2: memref<2x8x128xf32, #tpu.memory_space<vmem>>, %arg3: memref<4xf32, #tpu.memory_space<smem>>, %arg4: memref<2x8x128xf32, #tpu.memory_space<vmem>>, %arg5: memref<2x8x128xf32, #tpu.memory_space<vmem>>) attributes {dimension_semantics = [#tpu.dimension_semantics<arbitrary>], iteration_bounds = array<i64: 1>, scalar_prefetch = 0 : i64, scratch_operands = 2 : i64, tpu.core_type = #tpu.core_type<tc>, window_params = [{transform_indices = @transform_0, window_bounds = array<i64: 2, 8, 128>}, {transform_indices = @transform_1, window_bounds = array<i64: 2, 8, 128>}, {transform_indices = @transform_2, window_bounds = array<i64: 4>}]} {
    %c0_i32 = arith.constant 0 : i32
    %0 = arith.cmpi eq, %arg0, %c0_i32 : i32
    %1 = arith.extui %0 : i1 to i32
    %c0_i32_0 = arith.constant 0 : i32
    %2 = arith.cmpi ne, %1, %c0_i32_0 : i32
    scf.if %2 {
      %cst_26 = arith.constant 0.000000e+00 : f32
      %37 = vector.broadcast %cst_26 : f32 to vector<2x8x128xf32>
      %c0_27 = arith.constant 0 : index
      %c0_28 = arith.constant 0 : index
      %c0_29 = arith.constant 0 : index
      %38 = vector.load %arg4[%c0_27, %c0_28, %c0_29] : memref<2x8x128xf32, #tpu.memory_space<vmem>>, vector<2x8x128xf32>
      tpu.vector_store %arg4[%c0_27, %c0_28, %c0_29], %37 {strides = array<i32>} : memref<2x8x128xf32, #tpu.memory_space<vmem>>, vector<2x8x128xf32>,
      %cst_30 = arith.constant 0.000000e+00 : f32
      %39 = vector.broadcast %cst_30 : f32 to vector<2x8x128xf32>
      %c0_31 = arith.constant 0 : index
      %c0_32 = arith.constant 0 : index
      %c0_33 = arith.constant 0 : index
      %40 = vector.load %arg5[%c0_31, %c0_32, %c0_33] : memref<2x8x128xf32, #tpu.memory_space<vmem>>, vector<2x8x128xf32>
      tpu.vector_store %arg5[%c0_31, %c0_32, %c0_33], %39 {strides = array<i32>} : memref<2x8x128xf32, #tpu.memory_space<vmem>>, vector<2x8x128xf32>,
    } else {
    }
    %c0 = arith.constant 0 : index
    %c0_1 = arith.constant 0 : index
    %c0_2 = arith.constant 0 : index
    %3 = vector.load %arg1[%c0, %c0_1, %c0_2] : memref<2x8x128xf32, #tpu.memory_space<vmem>>, vector<2x8x128xf32>
    %c0_3 = arith.constant 0 : index
    %c0_4 = arith.constant 0 : index
    %c0_5 = arith.constant 0 : index
    %4 = vector.load %arg2[%c0_3, %c0_4, %c0_5] : memref<2x8x128xf32, #tpu.memory_space<vmem>>, vector<2x8x128xf32>
    %5 = arith.negf %3 : vector<2x8x128xf32>
    %6 = math.exp %5 : vector<2x8x128xf32>
    %cst = arith.constant 1.000000e+00 : f32
    %7 = vector.broadcast %cst : f32 to vector<2x8x128xf32>
    %8 = arith.addf %7, %6 : vector<2x8x128xf32>
    %9 = arith.divf %7, %8 : vector<2x8x128xf32>
    %cst_6 = arith.constant 6.000000e-01 : f32
    %10 = vector.broadcast %cst_6 : f32 to vector<2x8x128xf32>
    %11 = arith.mulf %4, %10 : vector<2x8x128xf32>
    %cst_7 = arith.constant 2.000000e-01 : f32
    %12 = vector.broadcast %cst_7 : f32 to vector<2x8x128xf32>
    %13 = arith.addf %11, %12 : vector<2x8x128xf32>
    %cst_8 = arith.constant 2.000000e+00 : f32
    %14 = vector.broadcast %cst_8 : f32 to vector<2x8x128xf32>
    %15 = arith.mulf %14, %9 : vector<2x8x128xf32>
    %cst_9 = arith.constant 1.000000e+00 : f32
    %16 = vector.broadcast %cst_9 : f32 to vector<2x8x128xf32>
    %17 = arith.subf %15, %16 : vector<2x8x128xf32>
    %18 = arith.mulf %13, %17 : vector<2x8x128xf32>
    %cst_10 = arith.constant 2.000000e+00 : f32
    %19 = vector.broadcast %cst_10 : f32 to vector<2x8x128xf32>
    %20 = arith.mulf %19, %4 : vector<2x8x128xf32>
    %cst_11 = arith.constant 1.000000e+00 : f32
    %21 = vector.broadcast %cst_11 : f32 to vector<2x8x128xf32>
    %22 = arith.subf %20, %21 : vector<2x8x128xf32>
    %23 = arith.mulf %13, %22 : vector<2x8x128xf32>
    %c0_12 = arith.constant 0 : index
    %c0_13 = arith.constant 0 : index
    %c0_14 = arith.constant 0 : index
    %24 = vector.load %arg4[%c0_12, %c0_13, %c0_14] : memref<2x8x128xf32, #tpu.memory_space<vmem>>, vector<2x8x128xf32>
    %25 = arith.mulf %18, %23 : vector<2x8x128xf32>
    %26 = arith.addf %24, %25 : vector<2x8x128xf32>
    %c0_15 = arith.constant 0 : index
    %c0_16 = arith.constant 0 : index
    %c0_17 = arith.constant 0 : index
    %27 = vector.load %arg4[%c0_15, %c0_16, %c0_17] : memref<2x8x128xf32, #tpu.memory_space<vmem>>, vector<2x8x128xf32>
    tpu.vector_store %arg4[%c0_15, %c0_16, %c0_17], %26 {strides = array<i32>} : memref<2x8x128xf32, #tpu.memory_space<vmem>>, vector<2x8x128xf32>,
    %c0_18 = arith.constant 0 : index
    %c0_19 = arith.constant 0 : index
    %c0_20 = arith.constant 0 : index
    %28 = vector.load %arg5[%c0_18, %c0_19, %c0_20] : memref<2x8x128xf32, #tpu.memory_space<vmem>>, vector<2x8x128xf32>
    %29 = arith.mulf %18, %18 : vector<2x8x128xf32>
    %30 = arith.mulf %23, %23 : vector<2x8x128xf32>
    %31 = arith.addf %29, %30 : vector<2x8x128xf32>
    %32 = arith.addf %28, %31 : vector<2x8x128xf32>
    %c0_21 = arith.constant 0 : index
    %c0_22 = arith.constant 0 : index
    %c0_23 = arith.constant 0 : index
    %33 = vector.load %arg5[%c0_21, %c0_22, %c0_23] : memref<2x8x128xf32, #tpu.memory_space<vmem>>, vector<2x8x128xf32>
    tpu.vector_store %arg5[%c0_21, %c0_22, %c0_23], %32 {strides = array<i32>} : memref<2x8x128xf32, #tpu.memory_space<vmem>>, vector<2x8x128xf32>,
    %c0_i32_24 = arith.constant 0 : i32
    %34 = arith.cmpi eq, %arg0, %c0_i32_24 : i32
    %35 = arith.extui %34 : i1 to i32
    %c0_i32_25 = arith.constant 0 : i32
    %36 = arith.cmpi ne, %35, %c0_i32_25 : i32
    scf.if %36 {
      %c0_26 = arith.constant 0 : index
      %c0_27 = arith.constant 0 : index
      %c0_28 = arith.constant 0 : index
      %37 = vector.load %arg4[%c0_26, %c0_27, %c0_28] : memref<2x8x128xf32, #tpu.memory_space<vmem>>, vector<1x8x128xf32>
      %38 = vector.shape_cast %37 : vector<1x8x128xf32> to vector<8x128xf32>
      %39 = vector.shape_cast %38 : vector<8x128xf32> to vector<1x8x128xf32>
      %cst_29 = arith.constant dense<0.000000e+00> : vector<1xf32>
      %40 = vector.multi_reduction <add>, %39, %cst_29 [1, 2] : vector<1x8x128xf32> to vector<1xf32>
      %41 = vector.shape_cast %40 : vector<1xf32> to vector<1x1x1xf32>
      %42 = vector.extract %41[0, 0, 0] : f32 from vector<1x1x1xf32>
      %c0_30 = arith.constant 0 : index
      %43 = memref.load %arg3[%c0_30] : memref<4xf32, #tpu.memory_space<smem>>
      memref.store %42, %arg3[%c0_30] : memref<4xf32, #tpu.memory_space<smem>>
      %c0_31 = arith.constant 0 : index
      %c0_32 = arith.constant 0 : index
      %c0_33 = arith.constant 0 : index
      %44 = vector.load %arg5[%c0_31, %c0_32, %c0_33] : memref<2x8x128xf32, #tpu.memory_space<vmem>>, vector<1x8x128xf32>
      %45 = vector.shape_cast %44 : vector<1x8x128xf32> to vector<8x128xf32>
      %46 = vector.shape_cast %45 : vector<8x128xf32> to vector<1x8x128xf32>
      %cst_34 = arith.constant dense<0.000000e+00> : vector<1xf32>
      %47 = vector.multi_reduction <add>, %46, %cst_34 [1, 2] : vector<1x8x128xf32> to vector<1xf32>
      %48 = vector.shape_cast %47 : vector<1xf32> to vector<1x1x1xf32>
      %49 = vector.extract %48[0, 0, 0] : f32 from vector<1x1x1xf32>
      %c2 = arith.constant 2 : index
      %50 = memref.load %arg3[%c2] : memref<4xf32, #tpu.memory_space<smem>>
      memref.store %49, %arg3[%c2] : memref<4xf32, #tpu.memory_space<smem>>
      %c1 = arith.constant 1 : index
      %c0_35 = arith.constant 0 : index
      %c0_36 = arith.constant 0 : index
      %51 = vector.load %arg4[%c1, %c0_35, %c0_36] : memref<2x8x128xf32, #tpu.memory_space<vmem>>, vector<1x8x128xf32>
      %52 = vector.shape_cast %51 : vector<1x8x128xf32> to vector<8x128xf32>
      %53 = vector.shape_cast %52 : vector<8x128xf32> to vector<1x8x128xf32>
      %cst_37 = arith.constant dense<0.000000e+00> : vector<1xf32>
      %54 = vector.multi_reduction <add>, %53, %cst_37 [1, 2] : vector<1x8x128xf32> to vector<1xf32>
      %55 = vector.shape_cast %54 : vector<1xf32> to vector<1x1x1xf32>
      %56 = vector.extract %55[0, 0, 0] : f32 from vector<1x1x1xf32>
      %c1_38 = arith.constant 1 : index
      %57 = memref.load %arg3[%c1_38] : memref<4xf32, #tpu.memory_space<smem>>
      memref.store %56, %arg3[%c1_38] : memref<4xf32, #tpu.memory_space<smem>>
      %c1_39 = arith.constant 1 : index
      %c0_40 = arith.constant 0 : index
      %c0_41 = arith.constant 0 : index
      %58 = vector.load %arg5[%c1_39, %c0_40, %c0_41] : memref<2x8x128xf32, #tpu.memory_space<vmem>>, vector<1x8x128xf32>
      %59 = vector.shape_cast %58 : vector<1x8x128xf32> to vector<8x128xf32>
      %60 = vector.shape_cast %59 : vector<8x128xf32> to vector<1x8x128xf32>
      %cst_42 = arith.constant dense<0.000000e+00> : vector<1xf32>
      %61 = vector.multi_reduction <add>, %60, %cst_42 [1, 2] : vector<1x8x128xf32> to vector<1xf32>
      %62 = vector.shape_cast %61 : vector<1xf32> to vector<1x1x1xf32>
      %63 = vector.extract %62[0, 0, 0] : f32 from vector<1x1x1xf32>
      %c3 = arith.constant 3 : index
      %64 = memref.load %arg3[%c3] : memref<4xf32, #tpu.memory_space<smem>>
      memref.store %63, %arg3[%c3] : memref<4xf32, #tpu.memory_space<smem>>
    } else {
    }
    return
  }
  func.func @transform_0(%arg0: i32) -> (i32, i32, i32) {
    %c0_i32 = arith.constant 0 : i32
    %c0_i32_0 = arith.constant 0 : i32
    %c0_i32_1 = arith.constant 0 : i32
    return %c0_i32, %arg0, %c0_i32_0 : i32, i32, i32
  }
  func.func @transform_1(%arg0: i32) -> (i32, i32, i32) {
    %c0_i32 = arith.constant 0 : i32
    %c0_i32_0 = arith.constant 0 : i32
    %c0_i32_1 = arith.constant 0 : i32
    return %c0_i32, %arg0, %c0_i32_0 : i32, i32, i32
  }
  func.func @transform_2(%arg0: i32) -> i32 {
    %c0_i32 = arith.constant 0 : i32
    %c0_i32_0 = arith.constant 0 : i32
    return %c0_i32 : i32
  }
}

</mosaic_0001>

<llo_original>
// kernel: tpu_custom_call.1
$region0: #{tpu_custom_call.1}
  #allocation0 [shape = 'u32[]', space=smem, size = 0x4, offset = 0x4, fixed_abs, tag = 'smem constant byte address 0x4 - core index']
  #allocation1 [shape = 'u32[144,128]{1,0:T(1,128)}', space=vmem, size = 0x12000, scoped, tag = 'internal scratch']
  #allocation2 [shape = 'f32[2,8,128]{2,1,0:T(8,128)}', space=vmem, size = 0x2000, scoped, tag = 'scratch operand']
  #allocation3 [shape = 'f32[2,8,128]{2,1,0:T(8,128)}', space=vmem, size = 0x2000, scoped, tag = 'scratch operand']
  %s0 = inlined_call_operand.hbm [shape: f32[2,8,128], index: 0, kind: input, shape index: {}]
  %s1 = inlined_call_operand.hbm [shape: f32[2,8,128], index: 1, kind: input, shape index: {}]
  %s2 = inlined_call_operand.hbm [shape: f32[4], index: 2, kind: output, shape index: {}]
  %s3 = sld [smem:[#allocation0]]
  $region34: #{tpu_custom_call.1} parent=0
    _
  %s5 = ssub.s32 1, %s3
  %s6 = scalar_select 0, %s5, %s3
  $region1: #{tpu_custom_call.1} parent=0
    #allocation4 [shape = 'u8[8192]{0}', space=vmem, size = 0x2000, scoped, tag = 'input window, operand 0, single buffered']
    #allocation5 [shape = 's32[1]{0}', space=sflag, size = 0x4, scoped, tag = 'scoped memory for tpu_custom_call.1']
    #allocation6 [shape = 's32[1]{0}', space=sflag, size = 0x4, scoped, tag = 'scoped memory for tpu_custom_call.1']
    #allocation7 [shape = 'u8[8192]{0}', space=vmem, size = 0x2000, scoped, tag = 'input window, operand 1, single buffered']
    #allocation8 [shape = 's32[1]{0}', space=sflag, size = 0x4, scoped, tag = 'scoped memory for tpu_custom_call.1']
    #allocation9 [shape = 'u8[512]{0}', space=smem, size = 0x200, scoped, tag = 'output window, operand 0, single buffered']
    %7 = vsyncpa [#allocation5], 0
    %8 = vsyncpa [#allocation8], 0
    %9 = vsyncpa [#allocation6], 0
    // Predicated region
    $region2: #{tpu_custom_call.1} parent=1 // pred_check
      _
    $region3: #{tpu_custom_call.1} parent=1 // pred_check_branch
      %11 = sbr.rel (0) target = $region5
    $region4: #{tpu_custom_call.1} parent=1 // pred_region
      %s13 = ssub.s32 256, 256
      %14 = vsyncadd [#allocation5], %s13
      %s15 = sshll.u32 [#allocation4], 4
      %s16 = int_to_ptr.vmem [resolvable:$true] %s15
      %21 = dma.hbm_to_vmem [thread:$0]  %s0, 256, %s16, [#allocation5], 128, 128, 8
    $region5: #{tpu_custom_call.1} parent=1 // pred_fallthru
      _
    // Predicated region
    $region6: #{tpu_custom_call.1} parent=1 // pred_check
      _
    $region7: #{tpu_custom_call.1} parent=1 // pred_check_branch
      %23 = sbr.rel (0) target = $region9
    $region8: #{tpu_custom_call.1} parent=1 // pred_region
      %s25 = ssub.s32 256, 256
      %26 = vsyncadd [#allocation8], %s25
      %s27 = sshll.u32 [#allocation7], 4
      %s28 = int_to_ptr.vmem [resolvable:$true] %s27
      %33 = dma.hbm_to_vmem [thread:$0]  %s1, 256, %s28, [#allocation8], 128, 128, 8
    $region9: #{tpu_custom_call.1} parent=1 // pred_fallthru
      _
    // Predicated region
    $region10: #{tpu_custom_call.1} parent=1 // pred_check
      _
    $region11: #{tpu_custom_call.1} parent=1 // pred_check_branch
      %35 = sbr.rel (0) target = $region13
    $region12: #{tpu_custom_call.1} parent=1 // pred_region
      %36 = dma.done [#allocation5], 256
    $region13: #{tpu_custom_call.1} parent=1 // pred_fallthru
      _
    // Predicated region
    $region14: #{tpu_custom_call.1} parent=1 // pred_check
      _
    $region15: #{tpu_custom_call.1} parent=1 // pred_check_branch
      %38 = sbr.rel (0) target = $region17
    $region16: #{tpu_custom_call.1} parent=1 // pred_region
      %39 = dma.done [#allocation8], 256
    $region17: #{tpu_custom_call.1} parent=1 // pred_fallthru
      _
    %p40 = scmp.eq.s32.totalorder 0, 0
    // Predicated region
    $region18: #{tpu_custom_call.1} parent=1 // pred_check
      %p41 = pneg %p40
    $region19: #{tpu_custom_call.1} parent=1 // pred_check_branch
      %43 = sbr.rel (%p41) target = $region21
    $region20: #{tpu_custom_call.1} parent=1 // pred_region
      %44 = vst [vmem:[#allocation2] sm:$0xff] 0.0
      %45 = vst [vmem:[#allocation2 + $0x8] sm:$0xff] 0.0
      %46 = vst [vmem:[#allocation3] sm:$0xff] 0.0
      %47 = vst [vmem:[#allocation3 + $0x8] sm:$0xff] 0.0
    $region21: #{tpu_custom_call.1} parent=1 // pred_fallthru
      _
    %v48 = vld [vmem:[#allocation4] sm:$0xff]
    %v49 = vld [vmem:[#allocation4 + $0x8] sm:$0xff]
    %v50 = vld [vmem:[#allocation7] sm:$0xff]
    %v51 = vld [vmem:[#allocation7 + $0x8] sm:$0xff]
    %v52 = vxor.u32 %v48, 2147483648
    %v53 = vxor.u32 %v49, 2147483648
    %v54 = vmul.f32 %v52, 1.442695
    %v55 = vpow.pop %v54
    %v56 = vmul.f32 %v53, 1.442695
    %v57 = vpow.pop %v56
    %v58 = vadd.f32 %v55, 1.0
    %v59 = vadd.f32 %v57, 1.0
    %v60 = vrcp.pop %v58
    %v61 = vmul.f32 1.0, %v60
    %v62 = vrcp.pop %v59
    %v63 = vmul.f32 1.0, %v62
    %v64 = vmul.f32 %v50, 0.6
    %v65 = vmul.f32 %v51, 0.6
    %v66 = vadd.f32 %v64, 0.2
    %v67 = vadd.f32 %v65, 0.2
    %v68 = vmul.f32 %v61, 2.0
    %v69 = vmul.f32 %v63, 2.0
    %v70 = vsub.f32 %v68, 1.0
    %v71 = vsub.f32 %v69, 1.0
    %v72 = vmul.f32 %v66, %v70
    %v73 = vmul.f32 %v67, %v71
    %v74 = vmul.f32 %v50, 2.0
    %v75 = vmul.f32 %v51, 2.0
    %v76 = vsub.f32 %v74, 1.0
    %v77 = vsub.f32 %v75, 1.0
    %v78 = vmul.f32 %v66, %v76
    %v79 = vmul.f32 %v67, %v77
    %v80 = vld [vmem:[#allocation2] sm:$0xff]
    %v81 = vld [vmem:[#allocation2 + $0x8] sm:$0xff]
    %v82 = vmul.f32 %v72, %v78
    %v83 = vmul.f32 %v73, %v79
    %v84 = vadd.f32 %v80, %v82
    %v85 = vadd.f32 %v81, %v83
    %86 = vst [vmem:[#allocation2] sm:$0xff] %v84
    %87 = vst [vmem:[#allocation2 + $0x8] sm:$0xff] %v85
    %v88 = vld [vmem:[#allocation3] sm:$0xff]
    %v89 = vld [vmem:[#allocation3 + $0x8] sm:$0xff]
    %v90 = vmul.f32 %v72, %v72
    %v91 = vmul.f32 %v73, %v73
    %v92 = vmul.f32 %v78, %v78
    %v93 = vmul.f32 %v79, %v79
    %v94 = vadd.f32 %v90, %v92
    %v95 = vadd.f32 %v91, %v93
    %v96 = vadd.f32 %v88, %v94
    %v97 = vadd.f32 %v89, %v95
    %98 = vst [vmem:[#allocation3] sm:$0xff] %v96
    %99 = vst [vmem:[#allocation3 + $0x8] sm:$0xff] %v97
    // Predicated region
    $region22: #{tpu_custom_call.1} parent=1 // pred_check
      %p100 = pneg %p40
    $region23: #{tpu_custom_call.1} parent=1 // pred_check_branch
      %102 = sbr.rel (%p100) target = $region25
    $region24: #{tpu_custom_call.1} parent=1 // pred_region
      %v103 = vld [vmem:[#allocation2] sm:$0xff]
      %104 = vadd.xlane.f32.xlu0 %v103
      %v105 = vpop.xlane.xlu0 %104
      %v106 = vrot.slane %v105, 4
      %v107 = vadd.f32 %v105, %v106
      %v108 = vrot.slane %v107, 2
      %v109 = vadd.f32 %v107, %v108
      %v110 = vrot.slane %v109, 1
      %v111 = vadd.f32 %v109, %v110
      %s112 = vtos %v111
      %s113 = scalar_lea.smem [#allocation9], 0
      %114 = sst [smem:[%s113]] %s112
      %v115 = vld [vmem:[#allocation3] sm:$0xff]
      %116 = vadd.xlane.f32.xlu0 %v115
      %v117 = vpop.xlane.xlu0 %116
      %v118 = vrot.slane %v117, 4
      %v119 = vadd.f32 %v117, %v118
      %v120 = vrot.slane %v119, 2
      %v121 = vadd.f32 %v119, %v120
      %v122 = vrot.slane %v121, 1
      %v123 = vadd.f32 %v121, %v122
      %s124 = vtos %v123
      %s125 = scalar_lea.smem [#allocation9], 2
      %126 = sst [smem:[%s125]] %s124
      %s127 = scalar_lea.vmem [#allocation2], 8
      %v128 = vld [vmem:[%s127] sm:$0xff]
      %129 = vadd.xlane.f32.xlu0 %v128
      %v130 = vpop.xlane.xlu0 %129
      %v131 = vrot.slane %v130, 4
      %v132 = vadd.f32 %v130, %v131
      %v133 = vrot.slane %v132, 2
      %v134 = vadd.f32 %v132, %v133
      %v135 = vrot.slane %v134, 1
      %v136 = vadd.f32 %v134, %v135
      %s137 = vtos %v136
      %s138 = scalar_lea.smem [#allocation9], 1
      %139 = sst [smem:[%s138]] %s137
      %s140 = scalar_lea.vmem [#allocation3], 8
      %v141 = vld [vmem:[%s140] sm:$0xff]
      %142 = vadd.xlane.f32.xlu0 %v141
      %v143 = vpop.xlane.xlu0 %142
      %v144 = vrot.slane %v143, 4
      %v145 = vadd.f32 %v143, %v144
      %v146 = vrot.slane %v145, 2
      %v147 = vadd.f32 %v145, %v146
      %v148 = vrot.slane %v147, 1
      %v149 = vadd.f32 %v147, %v148
      %s150 = vtos %v149
      %s151 = scalar_lea.smem [#allocation9], 3
      %152 = sst [smem:[%s151]] %s150
    $region25: #{tpu_custom_call.1} parent=1 // pred_fallthru
      _
    // Predicated region
    $region26: #{tpu_custom_call.1} parent=1 // pred_check
      _
    $region27: #{tpu_custom_call.1} parent=1 // pred_check_branch
      %154 = sbr.rel (0) target = $region29
    $region28: #{tpu_custom_call.1} parent=1 // pred_region
      %s156 = ssub.s32 16, 16
      %157 = vsyncadd [#allocation6], %s156
      %160 = dma.smem_to_hbm [#allocation9], 16, %s2, [#allocation6]
    $region29: #{tpu_custom_call.1} parent=1 // pred_fallthru
      _
    // Predicated region
    $region30: #{tpu_custom_call.1} parent=1 // pred_check
      _
    $region31: #{tpu_custom_call.1} parent=1 // pred_check_branch
      %162 = sbr.rel (0) target = $region33
    $region32: #{tpu_custom_call.1} parent=1 // pred_region
      %163 = dma.done [#allocation6], 16
    $region33: #{tpu_custom_call.1} parent=1 // pred_fallthru
      _
    %164 = sfence
    %165 = vsyncpa [#allocation5], 1
    %166 = vsyncpa [#allocation8], 1
    %167 = vsyncpa [#allocation6], 1

</llo_original>
